<compile_context>
chip_gen: v7x
topology: tpu7x:2x2x1
jax: 0.10.0
libtpu: 0.0.40
codegen_flags: <defaults>
</compile_context>

<pallas_src>
import functools
import math

import jax
import jax.numpy as jnp
from jax import lax
from jax.experimental import pallas as pl
from jax.experimental.pallas import tpu as pltpu


def _round_up(x, m):
    return ((x + m - 1) // m) * m


def _tile_row_losses(xa, xc, nb2, na2, cls_mask, row0, *, temperature,
                     base_temperature, curv_k, batch, tile_m, b_pad):
    """Per-row loss of one anchor-row tile (padded rows -> 0).  Returns [TM, 1].

    xa:  [TM, D]     anchor tile
    xc:  [B_pad, D]  full (padded) contrast set
    nb2: [TM, 1]     ||x_i||^2 for the anchor tile
    na2: [1, B_pad]  ||x_j||^2 for the contrast set
    cls_mask: [TM, B_pad] 1.0 where anchor i and contrast j share a class
    row0: global row index of the first anchor row in this tile
    """
    k = curv_k
    inv_t = 1.0 / temperature

    # Gram matrix <x_i, x_j> on the MXU: [TM, B_pad].
    gram = lax.dot_general(xa, xc, (((1,), (1,)), ((), ())),
                           preferred_element_type=jnp.float32)

    # mobius_add(a, b) with a = -x_j, b = x_i (geoopt stereographic, k < 0).
    dot_ab = -gram                                      # <a, b>
    alpha = 1.0 - 2.0 * k * dot_ab - k * nb2            # [TM, B_pad]
    beta = 1.0 + k * na2                                # [1, B_pad] (broadcast)
    den = 1.0 - 2.0 * k * dot_ab + (k * k) * (na2 * nb2)
    num_sq = alpha * alpha * na2 + 2.0 * alpha * (beta * dot_ab) + beta * beta * nb2
    num_sq = jnp.maximum(num_sq, 0.0)
    t1 = jnp.sqrt(num_sq) / jnp.maximum(den, 1e-15)

    # artan_k for k < 0: artanh(sqrt(-k) * t) / sqrt(-k);  dist = 2 * artan_k.
    sk = math.sqrt(-k)
    u = jnp.clip(sk * t1, 0.0, 1.0 - 1e-7)
    dist = (2.0 / sk) * (0.5 * jnp.log((1.0 + u) / (1.0 - u)))

    # similarity / temperature.  The per-row max is always the diagonal entry
    # (mobius_add(-x_i, x_i) = 0 -> dist = 0 -> sim = 1), i.e. exactly inv_t,
    # so subtract that constant instead of computing an XLU row-max.
    logits = inv_t / (1.0 + dist) - inv_t

    row = lax.broadcasted_iota(jnp.int32, (tile_m, b_pad), 0) + row0
    col = lax.broadcasted_iota(jnp.int32, (tile_m, b_pad), 1)
    valid = jnp.logical_and(row != col, col < batch)    # drop diag + padding
    logits_mask = valid.astype(jnp.float32)
    pos_mask = cls_mask * logits_mask

    denom = jnp.sum(jnp.where(valid, jnp.exp(logits), 0.0), axis=1, keepdims=True)
    log_denom = jnp.log(jnp.maximum(denom, 1e-30))                    # [TM, 1]
    sum_pos = jnp.sum(pos_mask * logits, axis=1, keepdims=True)       # [TM, 1]
    cnt_pos = jnp.sum(pos_mask, axis=1, keepdims=True)                # [TM, 1]
    # sum(pos * log_prob) = sum(pos * logits) - cnt * log(denom).
    # TODO(synk): rows with zero positives are 0/0 (NaN) in the reference; the
    # maximum() guard makes them contribute 0 instead of poisoning the mean.
    mean_log_prob_pos = (sum_pos - cnt_pos * log_denom) / jnp.maximum(cnt_pos, 1.0)
    loss_rows = (-(temperature / base_temperature)) * mean_log_prob_pos

    # Zero padded anchor rows so the wrapper can take a plain sum / batch.
    row_ids = lax.broadcasted_iota(jnp.int32, (tile_m, 1), 0) + row0
    return jnp.where(row_ids < batch, loss_rows, 0.0)


def _labels_kernel(la_ref, lc_ref, nsq_col_ref, nsq_row_ref, xa_ref, xc_ref,
                   out_ref, *, temperature, base_temperature, curv_k,
                   batch, tile_m, b_pad):
    i = pl.program_id(0)
    # In-kernel class mask from labels: no [B, B] mask DMA.
    cls_mask = jnp.where(la_ref[...] == lc_ref[...], 1.0, 0.0)   # [TM, B_pad]
    out_ref[...] = _tile_row_losses(
        xa_ref[...], xc_ref[...], nsq_col_ref[...], nsq_row_ref[...],
        cls_mask, i * tile_m,
        temperature=temperature, base_temperature=base_temperature,
        curv_k=curv_k, batch=batch, tile_m=tile_m, b_pad=b_pad)


def _mask_kernel(mask_ref, nsq_col_ref, nsq_row_ref, xa_ref, xc_ref,
                 out_ref, *, temperature, base_temperature, curv_k,
                 batch, tile_m, b_pad):
    i = pl.program_id(0)
    out_ref[...] = _tile_row_losses(
        xa_ref[...], xc_ref[...], nsq_col_ref[...], nsq_row_ref[...],
        mask_ref[...], i * tile_m,
        temperature=temperature, base_temperature=base_temperature,
        curv_k=curv_k, batch=batch, tile_m=tile_m, b_pad=b_pad)


def manifold_simclr_loss(features, labels=None, mask=None, *,
                         temperature=0.1, base_temperature=0.1, curv_k=-1.0,
                         tile_m=128):
    """JAX/Pallas equivalent of ManifoldSimCLRLoss.forward (non-Euclidean path)."""
    x = jnp.asarray(features, jnp.float32)
    if x.ndim != 2:
        raise ValueError("features must be [batch, dim]")
    B, D = x.shape
    if labels is not None and mask is not None:
        raise ValueError("Cannot define both `labels` and `mask`")

    # Anchor-row tile: multiple of 8 sublanes, capped at tile_m; pad B up to it.
    tm = min(int(tile_m), _round_up(B, 8))
    b_pad = _round_up(B, tm)
    pad = b_pad - B
    num_tiles = b_pad // tm

    xp = jnp.pad(x, ((0, pad), (0, 0))) if pad else x
    nsq = jnp.sum(xp * xp, axis=1)                 # squared norms, [B_pad]
    nsq_col = nsq.reshape(b_pad, 1)
    nsq_row = nsq.reshape(1, b_pad)

    common = dict(temperature=float(temperature),
                  base_temperature=float(base_temperature),
                  curv_k=float(curv_k), batch=B, tile_m=tm, b_pad=b_pad)
    cparams = pltpu.CompilerParams(
        dimension_semantics=("parallel",),         # tiles are independent
        vmem_limit_bytes=64 * 1024 * 1024)

    x_specs = [pl.BlockSpec((tm, 1), lambda i: (i, 0)),      # ||x_i||^2 tile
               pl.BlockSpec((1, b_pad), lambda i: (0, 0)),   # ||x_j||^2 resident
               pl.BlockSpec((tm, D), lambda i: (i, 0)),      # anchor tile
               pl.BlockSpec((b_pad, D), lambda i: (0, 0))]   # contrast resident
    out_spec = pl.BlockSpec((tm, 1), lambda i: (i, 0))       # per-row losses
    out_shape = jax.ShapeDtypeStruct((b_pad, 1), jnp.float32)

    if mask is None:
        if labels is None:
            # Reference default is an eye() mask; arange labels reproduce it.
            lab = jnp.arange(B, dtype=jnp.int32)
        else:
            lab = jnp.asarray(labels, jnp.int32).reshape(-1)
            if lab.shape[0] != B:
                raise ValueError("Num of labels does not match num of features")
        lab = jnp.pad(lab, (0, pad), constant_values=-1) if pad else lab
        la = lab.reshape(b_pad, 1)
        lc = lab.reshape(1, b_pad)
        kernel = functools.partial(_labels_kernel, **common)
        grid_spec = pltpu.PrefetchScalarGridSpec(
            num_scalar_prefetch=0, grid=(num_tiles,),
            in_specs=[pl.BlockSpec((tm, 1), lambda i: (i, 0)),
                      pl.BlockSpec((1, b_pad), lambda i: (0, 0))] + x_specs,
            out_specs=out_spec)
        rows = pl.pallas_call(kernel, out_shape=out_shape, grid_spec=grid_spec,
                              compiler_params=cparams)(
            la, lc, nsq_col, nsq_row, xp, xp)
    else:
        m = jnp.asarray(mask, jnp.float32)
        if m.shape != (B, B):
            raise ValueError("mask must be [batch, batch]")
        m = jnp.pad(m, ((0, pad), (0, pad))) if pad else m
        kernel = functools.partial(_mask_kernel, **common)
        grid_spec = pltpu.PrefetchScalarGridSpec(
            num_scalar_prefetch=0, grid=(num_tiles,),
            in_specs=[pl.BlockSpec((tm, b_pad), lambda i: (i, 0))] + x_specs,
            out_specs=out_spec)
        rows = pl.pallas_call(kernel, out_shape=out_shape, grid_spec=grid_spec,
                              compiler_params=cparams)(
            m, nsq_col, nsq_row, xp, xp)

    # Padded rows are zeroed inside the kernel; mean over the true batch.
    return jnp.sum(rows) / B


def _reference_loss(features, labels, *, temperature=0.1, base_temperature=0.1,
                    curv_k=-1.0):
    """Pure-JAX mirror of the PyTorch math (manifold branch) for validation."""
    x = jnp.asarray(features, jnp.float32)
    B = x.shape[0]
    labels = jnp.asarray(labels).reshape(B, 1)
    cls_mask = (labels == labels.T).astype(jnp.float32)
    k = float(curv_k)

    gram = x @ x.T
    n = jnp.sum(x * x, axis=1)
    na2 = n[None, :]          # ||x_j||^2
    nb2 = n[:, None]          # ||x_i||^2
    dot_ab = -gram
    alpha = 1.0 - 2.0 * k * dot_ab - k * nb2
    beta = 1.0 + k * na2
    den = 1.0 - 2.0 * k * dot_ab + (k * k) * na2 * nb2
    num_sq = jnp.maximum(alpha ** 2 * na2 + 2 * alpha * beta * dot_ab + beta ** 2 * nb2, 0.0)
    t1 = jnp.sqrt(num_sq) / jnp.maximum(den, 1e-15)
    sk = jnp.sqrt(-k)
    u = jnp.clip(sk * t1, 0.0, 1.0 - 1e-7)
    dist = 2.0 * (0.5 * jnp.log((1.0 + u) / (1.0 - u))) / sk
    dist = 1.0 / (1.0 + dist)

    adc = dist / temperature
    logits = adc - jnp.max(adc, axis=1, keepdims=True)
    logits_mask = 1.0 - jnp.eye(B, dtype=jnp.float32)
    pos_mask = cls_mask * logits_mask
    exp_logits = jnp.exp(logits) * logits_mask
    log_prob = logits - jnp.log(jnp.sum(exp_logits, axis=1, keepdims=True))
    mean_log_prob_pos = jnp.sum(pos_mask * log_prob, axis=1) / jnp.sum(pos_mask, axis=1)
    loss = -(temperature / base_temperature) * mean_log_prob_pos
    return jnp.mean(loss)


if __name__ == "__main__":
    key = jax.random.PRNGKey(0)
    B, D = 8, 32
    v = jax.random.normal(key, (B, D), dtype=jnp.float32)
    # Project onto a radius-0.6 sphere inside the Poincare ball (curvature k=-1).
    feats = 0.6 * v / (jnp.linalg.norm(v, axis=1, keepdims=True) + 1e-6)
    labels = jnp.array([0, 0, 1, 1, 2, 2, 3, 3], dtype=jnp.int32)

    loss = manifold_simclr_loss(feats, labels=labels)
    loss = jax.block_until_ready(loss)

    ref = _reference_loss(feats, labels)
    assert bool(jnp.isfinite(loss)), "kernel produced non-finite loss"
    # Exact divisions in-kernel keep the diff ~1e-6; a 5e-3 gate still catches
    # any formula / masking / tiling error (those shift the loss by O(0.1+)).
    assert abs(float(loss) - float(ref)) < 5e-3, (float(loss), float(ref))
    print("KERNEL_OK")
</pallas_src>

<mosaic_0001>
module attributes {stable_mosaic.version = 11 : i64} {
  func.func @_labels_kernel(%arg0: i32, %arg1: memref<8x1xi32, #tpu.memory_space<vmem>>, %arg2: memref<1x8xi32, #tpu.memory_space<vmem>>, %arg3: memref<8x1xf32, #tpu.memory_space<vmem>>, %arg4: memref<1x8xf32, #tpu.memory_space<vmem>>, %arg5: memref<8x32xf32, #tpu.memory_space<vmem>>, %arg6: memref<8x32xf32, #tpu.memory_space<vmem>>, %arg7: memref<8x1xf32, #tpu.memory_space<vmem>>) attributes {dimension_semantics = [#tpu.dimension_semantics<parallel>], iteration_bounds = array<i64: 1>, scalar_prefetch = 0 : i64, scratch_operands = 0 : i64, tpu.core_type = #tpu.core_type<tc>, window_params = [{transform_indices = @transform_0, window_bounds = array<i64: 8, 1>}, {pipeline_mode = #tpu.pipeline_mode<synchronous>, transform_indices = @transform_1, window_bounds = array<i64: 1, 8>}, {transform_indices = @transform_2, window_bounds = array<i64: 8, 1>}, {pipeline_mode = #tpu.pipeline_mode<synchronous>, transform_indices = @transform_3, window_bounds = array<i64: 1, 8>}, {transform_indices = @transform_4, window_bounds = array<i64: 8, 32>}, {pipeline_mode = #tpu.pipeline_mode<synchronous>, transform_indices = @transform_5, window_bounds = array<i64: 8, 32>}, {transform_indices = @transform_6, window_bounds = array<i64: 8, 1>}]} {
    %c0 = arith.constant 0 : index
    %c0_0 = arith.constant 0 : index
    %0 = vector.load %arg1[%c0, %c0_0] : memref<8x1xi32, #tpu.memory_space<vmem>>, vector<8x1xi32>
    %c0_1 = arith.constant 0 : index
    %c0_2 = arith.constant 0 : index
    %1 = vector.load %arg2[%c0_1, %c0_2] : memref<1x8xi32, #tpu.memory_space<vmem>>, vector<1x8xi32>
    %2 = vector.broadcast %0 : vector<8x1xi32> to vector<8x8xi32>
    %3 = vector.broadcast %1 : vector<1x8xi32> to vector<8x8xi32>
    %4 = arith.cmpi eq, %2, %3 : vector<8x8xi32>
    %cst = arith.constant 1.000000e+00 : f32
    %cst_3 = arith.constant 0.000000e+00 : f32
    %5 = vector.broadcast %cst : f32 to vector<8x8xf32>
    %6 = vector.broadcast %cst_3 : f32 to vector<8x8xf32>
    %7 = arith.select %4, %5, %6 : vector<8x8xi1>, vector<8x8xf32>
    %c0_4 = arith.constant 0 : index
    %c0_5 = arith.constant 0 : index
    %8 = vector.load %arg5[%c0_4, %c0_5] : memref<8x32xf32, #tpu.memory_space<vmem>>, vector<8x32xf32>
    %c0_6 = arith.constant 0 : index
    %c0_7 = arith.constant 0 : index
    %9 = vector.load %arg6[%c0_6, %c0_7] : memref<8x32xf32, #tpu.memory_space<vmem>>, vector<8x32xf32>
    %c0_8 = arith.constant 0 : index
    %c0_9 = arith.constant 0 : index
    %10 = vector.load %arg3[%c0_8, %c0_9] : memref<8x1xf32, #tpu.memory_space<vmem>>, vector<8x1xf32>
    %c0_10 = arith.constant 0 : index
    %c0_11 = arith.constant 0 : index
    %11 = vector.load %arg4[%c0_10, %c0_11] : memref<1x8xf32, #tpu.memory_space<vmem>>, vector<1x8xf32>
    %c8_i32 = arith.constant 8 : i32
    %12 = arith.muli %arg0, %c8_i32 : i32
    %cst_12 = arith.constant dense<0.000000e+00> : vector<8x8xf32>
    %13 = tpu.matmul %8, %9, %cst_12 {dimension_numbers = #tpu.dot_dimension_numbers<[1], [1], [0], [0], [0, 0, 1, 0], [], []>} : vector<8x32xf32>, vector<8x32xf32>, vector<8x8xf32> -> vector<8x8xf32>
    %cst_13 = arith.constant 0.000000e+00 : f32
    %14 = vector.broadcast %cst_13 : f32 to vector<8x8xf32>
    %15 = arith.subf %14, %13 : vector<8x8xf32>
    %cst_14 = arith.constant -2.000000e+00 : f32
    %16 = vector.broadcast %cst_14 : f32 to vector<8x8xf32>
    %17 = arith.mulf %16, %15 : vector<8x8xf32>
    %cst_15 = arith.constant 1.000000e+00 : f32
    %18 = vector.broadcast %cst_15 : f32 to vector<8x8xf32>
    %19 = arith.subf %18, %17 : vector<8x8xf32>
    %cst_16 = arith.constant -1.000000e+00 : f32
    %20 = vector.broadcast %cst_16 : f32 to vector<8x1xf32>
    %21 = arith.mulf %20, %10 : vector<8x1xf32>
    %22 = vector.broadcast %21 : vector<8x1xf32> to vector<8x8xf32>
    %23 = arith.subf %19, %22 : vector<8x8xf32>
    %cst_17 = arith.constant -1.000000e+00 : f32
    %24 = vector.broadcast %cst_17 : f32 to vector<1x8xf32>
    %25 = arith.mulf %24, %11 : vector<1x8xf32>
    %cst_18 = arith.constant 1.000000e+00 : f32
    %26 = vector.broadcast %cst_18 : f32 to vector<1x8xf32>
    %27 = arith.addf %26, %25 : vector<1x8xf32>
    %cst_19 = arith.constant -2.000000e+00 : f32
    %28 = vector.broadcast %cst_19 : f32 to vector<8x8xf32>
    %29 = arith.mulf %28, %15 : vector<8x8xf32>
    %cst_20 = arith.constant 1.000000e+00 : f32
    %30 = vector.broadcast %cst_20 : f32 to vector<8x8xf32>
    %31 = arith.subf %30, %29 : vector<8x8xf32>
    %32 = vector.broadcast %11 : vector<1x8xf32> to vector<8x8xf32>
    %33 = vector.broadcast %10 : vector<8x1xf32> to vector<8x8xf32>
    %34 = arith.mulf %32, %33 : vector<8x8xf32>
    %cst_21 = arith.constant 1.000000e+00 : f32
    %35 = vector.broadcast %cst_21 : f32 to vector<8x8xf32>
    %36 = arith.mulf %35, %34 : vector<8x8xf32>
    %37 = arith.addf %31, %36 : vector<8x8xf32>
    %38 = arith.mulf %23, %23 : vector<8x8xf32>
    %39 = vector.broadcast %11 : vector<1x8xf32> to vector<8x8xf32>
    %40 = arith.mulf %38, %39 : vector<8x8xf32>
    %cst_22 = arith.constant 2.000000e+00 : f32
    %41 = vector.broadcast %cst_22 : f32 to vector<8x8xf32>
    %42 = arith.mulf %41, %23 : vector<8x8xf32>
    %43 = vector.broadcast %27 : vector<1x8xf32> to vector<8x8xf32>
    %44 = arith.mulf %43, %15 : vector<8x8xf32>
    %45 = arith.mulf %42, %44 : vector<8x8xf32>
    %46 = arith.addf %40, %45 : vector<8x8xf32>
    %47 = arith.mulf %27, %27 : vector<1x8xf32>
    %48 = vector.broadcast %47 : vector<1x8xf32> to vector<8x8xf32>
    %49 = vector.broadcast %10 : vector<8x1xf32> to vector<8x8xf32>
    %50 = arith.mulf %48, %49 : vector<8x8xf32>
    %51 = arith.addf %46, %50 : vector<8x8xf32>
    %cst_23 = arith.constant 0.000000e+00 : f32
    %52 = vector.broadcast %cst_23 : f32 to vector<8x8xf32>
    %53 = arith.maximumf %51, %52 : vector<8x8xf32>
    %54 = math.sqrt %53 : vector<8x8xf32>
    %cst_24 = arith.constant 1.000000e-15 : f32
    %55 = vector.broadcast %cst_24 : f32 to vector<8x8xf32>
    %56 = arith.maximumf %37, %55 : vector<8x8xf32>
    %57 = arith.divf %54, %56 : vector<8x8xf32>
    %cst_25 = arith.constant 1.000000e+00 : f32
    %58 = vector.broadcast %cst_25 : f32 to vector<8x8xf32>
    %59 = arith.mulf %58, %57 : vector<8x8xf32>
    %cst_26 = arith.constant 0.000000e+00 : f32
    %cst_27 = arith.constant 0.99999988 : f32
    %60 = vector.broadcast %cst_26 : f32 to vector<8x8xf32>
    %61 = arith.maximumf %60, %59 : vector<8x8xf32>
    %62 = vector.broadcast %cst_27 : f32 to vector<8x8xf32>
    %63 = arith.minimumf %62, %61 : vector<8x8xf32>
    %cst_28 = arith.constant 1.000000e+00 : f32
    %64 = vector.broadcast %cst_28 : f32 to vector<8x8xf32>
    %65 = arith.addf %64, %63 : vector<8x8xf32>
    %cst_29 = arith.constant 1.000000e+00 : f32
    %66 = vector.broadcast %cst_29 : f32 to vector<8x8xf32>
    %67 = arith.subf %66, %63 : vector<8x8xf32>
    %68 = arith.divf %65, %67 : vector<8x8xf32>
    %69 = math.log %68 : vector<8x8xf32>
    %cst_30 = arith.constant 5.000000e-01 : f32
    %70 = vector.broadcast %cst_30 : f32 to vector<8x8xf32>
    %71 = arith.mulf %70, %69 : vector<8x8xf32>
    %cst_31 = arith.constant 2.000000e+00 : f32
    %72 = vector.broadcast %cst_31 : f32 to vector<8x8xf32>
    %73 = arith.mulf %72, %71 : vector<8x8xf32>
    %cst_32 = arith.constant 1.000000e+00 : f32
    %74 = vector.broadcast %cst_32 : f32 to vector<8x8xf32>
    %75 = arith.addf %74, %73 : vector<8x8xf32>
    %cst_33 = arith.constant 1.000000e+01 : f32
    %76 = vector.broadcast %cst_33 : f32 to vector<8x8xf32>
    %77 = arith.divf %76, %75 : vector<8x8xf32>
    %cst_34 = arith.constant 1.000000e+01 : f32
    %78 = vector.broadcast %cst_34 : f32 to vector<8x8xf32>
    %79 = arith.subf %77, %78 : vector<8x8xf32>
    %80 = tpu.iota {dimensions = array<i32: 0>} : vector<8x8xi32>
    %81 = vector.broadcast %12 : i32 to vector<8x8xi32>
    %82 = arith.addi %80, %81 : vector<8x8xi32>
    %83 = tpu.iota {dimensions = array<i32: 1>} : vector<8x8xi32>
    %84 = arith.cmpi ne, %82, %83 : vector<8x8xi32>
    %c8_i32_35 = arith.constant 8 : i32
    %85 = vector.broadcast %c8_i32_35 : i32 to vector<8x8xi32>
    %86 = arith.cmpi slt, %83, %85 : vector<8x8xi32>
    %87 = arith.andi %84, %86 : vector<8x8xi1>
    %88 = arith.extui %87 : vector<8x8xi1> to vector<8x8xi32>
    %89 = arith.sitofp %88 : vector<8x8xi32> to vector<8x8xf32>
    %90 = arith.mulf %7, %89 : vector<8x8xf32>
    %91 = math.exp %79 : vector<8x8xf32>
    %cst_36 = arith.constant 0.000000e+00 : f32
    %92 = vector.broadcast %cst_36 : f32 to vector<8x8xf32>
    %93 = arith.select %87, %91, %92 : vector<8x8xi1>, vector<8x8xf32>
    %cst_37 = arith.constant dense<0.000000e+00> : vector<8xf32>
    %94 = vector.multi_reduction <add>, %93, %cst_37 [1] : vector<8x8xf32> to vector<8xf32>
    %95 = vector.shape_cast %94 : vector<8xf32> to vector<8x1xf32>
    %cst_38 = arith.constant 1.000000e-30 : f32
    %96 = vector.broadcast %cst_38 : f32 to vector<8x1xf32>
    %97 = arith.maximumf %95, %96 : vector<8x1xf32>
    %98 = math.log %97 : vector<8x1xf32>
    %99 = arith.mulf %90, %79 : vector<8x8xf32>
    %cst_39 = arith.constant dense<0.000000e+00> : vector<8xf32>
    %100 = vector.multi_reduction <add>, %99, %cst_39 [1] : vector<8x8xf32> to vector<8xf32>
    %101 = vector.shape_cast %100 : vector<8xf32> to vector<8x1xf32>
    %cst_40 = arith.constant dense<0.000000e+00> : vector<8xf32>
    %102 = vector.multi_reduction <add>, %90, %cst_40 [1] : vector<8x8xf32> to vector<8xf32>
    %103 = vector.shape_cast %102 : vector<8xf32> to vector<8x1xf32>
    %104 = arith.mulf %103, %98 : vector<8x1xf32>
    %105 = arith.subf %101, %104 : vector<8x1xf32>
    %cst_41 = arith.constant 1.000000e+00 : f32
    %106 = vector.broadcast %cst_41 : f32 to vector<8x1xf32>
    %107 = arith.maximumf %103, %106 : vector<8x1xf32>
    %108 = arith.divf %105, %107 : vector<8x1xf32>
    %cst_42 = arith.constant -1.000000e+00 : f32
    %109 = vector.broadcast %cst_42 : f32 to vector<8x1xf32>
    %110 = arith.mulf %109, %108 : vector<8x1xf32>
    %111 = tpu.iota {dimensions = array<i32: 0>} : vector<8x1xi32>
    %112 = vector.broadcast %12 : i32 to vector<8x1xi32>
    %113 = arith.addi %111, %112 : vector<8x1xi32>
    %c8_i32_43 = arith.constant 8 : i32
    %114 = vector.broadcast %c8_i32_43 : i32 to vector<8x1xi32>
    %115 = arith.cmpi slt, %113, %114 : vector<8x1xi32>
    %cst_44 = arith.constant 0.000000e+00 : f32
    %116 = vector.broadcast %cst_44 : f32 to vector<8x1xf32>
    %117 = arith.select %115, %110, %116 : vector<8x1xi1>, vector<8x1xf32>
    %c0_45 = arith.constant 0 : index
    %c0_46 = arith.constant 0 : index
    %118 = vector.load %arg7[%c0_45, %c0_46] : memref<8x1xf32, #tpu.memory_space<vmem>>, vector<8x1xf32>
    tpu.vector_store %arg7[%c0_45, %c0_46], %117 {strides = array<i32>} : memref<8x1xf32, #tpu.memory_space<vmem>>, vector<8x1xf32>,
    return
  }
  func.func @transform_0(%arg0: i32) -> (i32, i32) {
    %c0_i32 = arith.constant 0 : i32
    %c0_i32_0 = arith.constant 0 : i32
    return %arg0, %c0_i32 : i32, i32
  }
  func.func @transform_1(%arg0: i32) -> (i32, i32) {
    %c0_i32 = arith.constant 0 : i32
    %c0_i32_0 = arith.constant 0 : i32
    %c0_i32_1 = arith.constant 0 : i32
    return %c0_i32, %c0_i32_0 : i32, i32
  }
  func.func @transform_2(%arg0: i32) -> (i32, i32) {
    %c0_i32 = arith.constant 0 : i32
    %c0_i32_0 = arith.constant 0 : i32
    return %arg0, %c0_i32 : i32, i32
  }
  func.func @transform_3(%arg0: i32) -> (i32, i32) {
    %c0_i32 = arith.constant 0 : i32
    %c0_i32_0 = arith.constant 0 : i32
    %c0_i32_1 = arith.constant 0 : i32
    return %c0_i32, %c0_i32_0 : i32, i32
  }
  func.func @transform_4(%arg0: i32) -> (i32, i32) {
    %c0_i32 = arith.constant 0 : i32
    %c0_i32_0 = arith.constant 0 : i32
    return %arg0, %c0_i32 : i32, i32
  }
  func.func @transform_5(%arg0: i32) -> (i32, i32) {
    %c0_i32 = arith.constant 0 : i32
    %c0_i32_0 = arith.constant 0 : i32
    %c0_i32_1 = arith.constant 0 : i32
    return %c0_i32, %c0_i32_0 : i32, i32
  }
  func.func @transform_6(%arg0: i32) -> (i32, i32) {
    %c0_i32 = arith.constant 0 : i32
    %c0_i32_0 = arith.constant 0 : i32
    return %arg0, %c0_i32 : i32, i32
  }
}

</mosaic_0001>

<llo_original>
// kernel: tpu_custom_call.1
$region0: #{tpu_custom_call.1}
  #allocation0 [shape = 'u32[]', space=smem, size = 0x4, offset = 0x4, fixed_abs, tag = 'smem constant byte address 0x4 - core index']
  #allocation1 [shape = 'u32[144,128]{1,0:T(1,128)}', space=vmem, size = 0x12000, scoped, tag = 'internal scratch']
  %s0 = inlined_call_operand.hbm [shape: s32[8,1], index: 0, kind: input, shape index: {}]
  %s1 = inlined_call_operand.hbm [shape: s32[1,8], index: 1, kind: input, shape index: {}]
  %s2 = inlined_call_operand.hbm [shape: f32[8,1], index: 2, kind: input, shape index: {}]
  %s3 = inlined_call_operand.hbm [shape: f32[1,8], index: 3, kind: input, shape index: {}]
  %s4 = inlined_call_operand.hbm [shape: f32[8,32], index: 4, kind: input, shape index: {}]
  %s5 = inlined_call_operand.hbm [shape: f32[8,32], index: 5, kind: input, shape index: {}]
  %s6 = inlined_call_operand.hbm [shape: f32[8,1], index: 6, kind: output, shape index: {}]
  %s7 = sld [smem:[#allocation0]]
  $region58: #{tpu_custom_call.1} parent=0
    _
  %s9 = ssub.s32 1, %s7
  %s10 = scalar_select 0, %s9, %s7
  $region1: #{tpu_custom_call.1} parent=0
    #allocation2 [shape = 'u8[4096]{0}', space=vmem, size = 0x1000, scoped, tag = 'input window, operand 0, single buffered']
    #allocation3 [shape = 's32[1]{0}', space=sflag, size = 0x4, scoped, tag = 'scoped memory for tpu_custom_call.1']
    #allocation4 [shape = 's32[1]{0}', space=sflag, size = 0x4, scoped, tag = 'scoped memory for tpu_custom_call.1']
    #allocation5 [shape = 'u8[512]{0}', space=vmem, size = 0x400, scoped, tag = 'input window, operand 1, single buffered']
    #allocation6 [shape = 's32[1]{0}', space=sflag, size = 0x4, scoped, tag = 'scoped memory for tpu_custom_call.1']
    #allocation7 [shape = 'u8[4096]{0}', space=vmem, size = 0x1000, scoped, tag = 'input window, operand 2, single buffered']
    #allocation8 [shape = 'u8[512]{0}', space=vmem, size = 0x400, scoped, tag = 'input window, operand 3, single buffered']
    #allocation9 [shape = 's32[1]{0}', space=sflag, size = 0x4, scoped, tag = 'scoped memory for tpu_custom_call.1']
    #allocation10 [shape = 'u8[4096]{0}', space=vmem, size = 0x1000, scoped, tag = 'input window, operand 4, single buffered']
    #allocation11 [shape = 'u8[4096]{0}', space=vmem, size = 0x1000, scoped, tag = 'input window, operand 5, single buffered']
    #allocation12 [shape = 's32[1]{0}', space=sflag, size = 0x4, scoped, tag = 'scoped memory for tpu_custom_call.1']
    #allocation13 [shape = 'u8[4096]{0}', space=vmem, size = 0x1000, scoped, tag = 'output window, operand 0, single buffered']
    %11 = vsyncpa [#allocation3], 0
    %12 = vsyncpa [#allocation6], 0
    %13 = vsyncpa [#allocation9], 0
    %14 = vsyncpa [#allocation12], 0
    %15 = vsyncpa [#allocation4], 0
    // Predicated region
    $region2: #{tpu_custom_call.1} parent=1 // pred_check
      _
    $region3: #{tpu_custom_call.1} parent=1 // pred_check_branch
      %17 = sbr.rel (0) target = $region5
    $region4: #{tpu_custom_call.1} parent=1 // pred_region
      %s19 = ssub.s32 128, 128
      %20 = vsyncadd [#allocation3], %s19
      %s22 = sshll.u32 [#allocation2], 4
      %s23 = int_to_ptr.vmem [resolvable:$true] %s22
      %25 = dma.hbm_to_vmem [thread:$0]  %s0, 128, %s23, [#allocation3]
    $region5: #{tpu_custom_call.1} parent=1 // pred_fallthru
      _
    // Predicated region
    $region6: #{tpu_custom_call.1} parent=1 // pred_check
      _
    $region7: #{tpu_custom_call.1} parent=1 // pred_check_branch
      %27 = sbr.rel (0) target = $region9
    $region8: #{tpu_custom_call.1} parent=1 // pred_region
      %s29 = ssub.s32 16, 16
      %30 = vsyncadd [#allocation6], %s29
      %s32 = sshll.u32 [#allocation5], 4
      %s33 = int_to_ptr.vmem [resolvable:$true] %s32
      %35 = dma.hbm_to_vmem [thread:$0]  %s1, 16, %s33, [#allocation6]
    $region9: #{tpu_custom_call.1} parent=1 // pred_fallthru
      _
    // Predicated region
    $region10: #{tpu_custom_call.1} parent=1 // pred_check
      _
    $region11: #{tpu_custom_call.1} parent=1 // pred_check_branch
      %37 = sbr.rel (0) target = $region13
    $region12: #{tpu_custom_call.1} parent=1 // pred_region
      %s39 = ssub.s32 128, 128
      %40 = vsyncadd [#allocation6], %s39
      %s42 = sshll.u32 [#allocation7], 4
      %s43 = int_to_ptr.vmem [resolvable:$true] %s42
      %45 = dma.hbm_to_vmem [thread:$0]  %s2, 128, %s43, [#allocation6]
    $region13: #{tpu_custom_call.1} parent=1 // pred_fallthru
      _
    // Predicated region
    $region14: #{tpu_custom_call.1} parent=1 // pred_check
      _
    $region15: #{tpu_custom_call.1} parent=1 // pred_check_branch
      %47 = sbr.rel (0) target = $region17
    $region16: #{tpu_custom_call.1} parent=1 // pred_region
      %s49 = ssub.s32 16, 16
      %50 = vsyncadd [#allocation9], %s49
      %s52 = sshll.u32 [#allocation8], 4
      %s53 = int_to_ptr.vmem [resolvable:$true] %s52
      %55 = dma.hbm_to_vmem [thread:$0]  %s3, 16, %s53, [#allocation9]
    $region17: #{tpu_custom_call.1} parent=1 // pred_fallthru
      _
    // Predicated region
    $region18: #{tpu_custom_call.1} parent=1 // pred_check
      _
    $region19: #{tpu_custom_call.1} parent=1 // pred_check_branch
      %57 = sbr.rel (0) target = $region21
    $region20: #{tpu_custom_call.1} parent=1 // pred_region
      %s59 = ssub.s32 128, 128
      %60 = vsyncadd [#allocation9], %s59
      %s62 = sshll.u32 [#allocation10], 4
      %s63 = int_to_ptr.vmem [resolvable:$true] %s62
      %65 = dma.hbm_to_vmem [thread:$0]  %s4, 128, %s63, [#allocation9]
    $region21: #{tpu_custom_call.1} parent=1 // pred_fallthru
      _
    // Predicated region
    $region22: #{tpu_custom_call.1} parent=1 // pred_check
      _
    $region23: #{tpu_custom_call.1} parent=1 // pred_check_branch
      %67 = sbr.rel (0) target = $region25
    $region24: #{tpu_custom_call.1} parent=1 // pred_region
      %s69 = ssub.s32 128, 128
      %70 = vsyncadd [#allocation12], %s69
      %s72 = sshll.u32 [#allocation11], 4
      %s73 = int_to_ptr.vmem [resolvable:$true] %s72
      %75 = dma.hbm_to_vmem [thread:$0]  %s5, 128, %s73, [#allocation12]
    $region25: #{tpu_custom_call.1} parent=1 // pred_fallthru
      _
    // Predicated region
    $region26: #{tpu_custom_call.1} parent=1 // pred_check
      _
    $region27: #{tpu_custom_call.1} parent=1 // pred_check_branch
      %77 = sbr.rel (0) target = $region29
    $region28: #{tpu_custom_call.1} parent=1 // pred_region
      %78 = dma.done [#allocation3], 128
    $region29: #{tpu_custom_call.1} parent=1 // pred_fallthru
      _
    // Predicated region
    $region30: #{tpu_custom_call.1} parent=1 // pred_check
      _
    $region31: #{tpu_custom_call.1} parent=1 // pred_check_branch
      %80 = sbr.rel (0) target = $region33
    $region32: #{tpu_custom_call.1} parent=1 // pred_region
      %81 = dma.done [#allocation6], 16
    $region33: #{tpu_custom_call.1} parent=1 // pred_fallthru
      _
    // Predicated region
    $region34: #{tpu_custom_call.1} parent=1 // pred_check
      _
    $region35: #{tpu_custom_call.1} parent=1 // pred_check_branch
      %83 = sbr.rel (0) target = $region37
    $region36: #{tpu_custom_call.1} parent=1 // pred_region
      %84 = dma.done [#allocation6], 128
    $region37: #{tpu_custom_call.1} parent=1 // pred_fallthru
      _
    // Predicated region
    $region38: #{tpu_custom_call.1} parent=1 // pred_check
      _
    $region39: #{tpu_custom_call.1} parent=1 // pred_check_branch
      %86 = sbr.rel (0) target = $region41
    $region40: #{tpu_custom_call.1} parent=1 // pred_region
      %87 = dma.done [#allocation9], 16
    $region41: #{tpu_custom_call.1} parent=1 // pred_fallthru
      _
    // Predicated region
    $region42: #{tpu_custom_call.1} parent=1 // pred_check
      _
    $region43: #{tpu_custom_call.1} parent=1 // pred_check_branch
      %89 = sbr.rel (0) target = $region45
    $region44: #{tpu_custom_call.1} parent=1 // pred_region
      %90 = dma.done [#allocation9], 128
    $region45: #{tpu_custom_call.1} parent=1 // pred_fallthru
      _
    // Predicated region
    $region46: #{tpu_custom_call.1} parent=1 // pred_check
      _
    $region47: #{tpu_custom_call.1} parent=1 // pred_check_branch
      %92 = sbr.rel (0) target = $region49
    $region48: #{tpu_custom_call.1} parent=1 // pred_region
      %93 = dma.done [#allocation12], 128
    $region49: #{tpu_custom_call.1} parent=1 // pred_fallthru
      _
    %v94 = vld [vmem:[#allocation2] sm:$0xff]
    %v95 = vld [vmem:[#allocation5] sm:$0x1]
    %96 = vset.pattern.permute.xlu0 0
    %97 = vperm.xlu0 %96, %v94
    %v98 = vpop.permute.xlu0 %97
    %v99 = vlaneseq
    %v100 = vshrl.u32 %v99, 7
    %v101 = vsub.s32 0, %v100
    %v102 = vrot.slane %v95, %v101
    %vm103 = vcmp.eq.s32.totalorder %v98, %v102
    %v104 = vsel %vm103, 1.0, 0.0
    %v105 = vld [vmem:[#allocation10] sm:$0xff]
    %v106 = vld [vmem:[#allocation11] sm:$0xff]
    %v107 = vld [vmem:[#allocation7] sm:$0xff]
    %v108 = vld [vmem:[#allocation8] sm:$0x1]
    %s109 = smul.u32 0, 8
    %vm110 = vcmask 261120
    %v112 = vsel %vm110, %v105, 0
    %v115 = vsel %vm110, %v106, 0
    %117 = vmatprep.subr.mxu0 0.0
    %118 = vmatpush1.xpose.msra.mxu0 %v115
    %119 = vmatprep.subr.mxu0 0.0
    %120 = vmatpush1.xpose.msra.mxu0 0.0
    %121 = vmatprep.subr.mxu0 0.0
    %122 = vmatpush1.xpose.msra.mxu0 0.0
    %123 = vmatprep.subr.mxu0 0.0
    %124 = vmatpush1.xpose.msra.mxu0 0.0
    %125 = vmatprep.subr.mxu0 0.0
    %126 = vmatpush1.xpose.msra.mxu0 0.0
    %127 = vmatprep.subr.mxu0 0.0
    %128 = vmatpush1.xpose.msra.mxu0 0.0
    %129 = vmatprep.subr.mxu0 0.0
    %130 = vmatpush1.xpose.msra.mxu0 0.0
    %131 = vmatprep.subr.mxu0 0.0
    %132 = vmatpush1.xpose.msra.mxu0 0.0
    %133 = vmatprep.subr.mxu0 0.0
    %134 = vmatpush1.xpose.msra.mxu0 0.0
    %135 = vmatprep.subr.mxu0 0.0
    %136 = vmatpush1.xpose.msra.mxu0 0.0
    %137 = vmatprep.subr.mxu0 0.0
    %138 = vmatpush1.xpose.msra.mxu0 0.0
    %139 = vmatprep.subr.mxu0 0.0
    %140 = vmatpush1.xpose.msra.mxu0 0.0
    %141 = vmatprep.subr.mxu0 0.0
    %142 = vmatpush1.xpose.msra.mxu0 0.0
    %143 = vmatprep.subr.mxu0 0.0
    %144 = vmatpush1.xpose.msra.mxu0 0.0
    %145 = vmatprep.subr.mxu0 0.0
    %146 = vmatpush1.xpose.msra.mxu0 0.0
    %147 = vmatprep.subr.mxu0 0.0
    %148 = vmatpush1.xpose.msra.mxu0 0.0
    %149 = vmatprep.subr.mxu0 0.0
    %150 = vmatpush1.xpose.msra.mxu0 0.0
    %151 = vmatprep.subr.mxu0 0.0
    %152 = vmatpush1.xpose.msra.mxu0 0.0
    %153 = vmatprep.subr.mxu0 0.0
    %154 = vmatpush1.xpose.msra.mxu0 0.0
    %155 = vmatprep.subr.mxu0 0.0
    %156 = vmatpush1.xpose.msra.mxu0 0.0
    %157 = vmatprep.subr.mxu0 0.0
    %158 = vmatpush1.xpose.msra.mxu0 0.0
    %159 = vmatprep.subr.mxu0 0.0
    %160 = vmatpush1.xpose.msra.mxu0 0.0
    %161 = vmatprep.subr.mxu0 0.0
    %162 = vmatpush1.xpose.msra.mxu0 0.0
    %163 = vmatprep.subr.mxu0 0.0
    %164 = vmatpush1.xpose.msra.mxu0 0.0
    %165 = vmatprep.subr.mxu0 0.0
    %166 = vmatpush1.xpose.msra.mxu0 0.0
    %167 = vmatprep.subr.mxu0 0.0
    %168 = vmatpush1.xpose.msra.mxu0 0.0
    %169 = vmatprep.subr.mxu0 0.0
    %170 = vmatpush1.xpose.msra.mxu0 0.0
    %171 = vmatprep.subr.mxu0 0.0
    %172 = vmatpush1.xpose.msra.mxu0 0.0
    %173 = vmatprep.subr.mxu0 0.0
    %174 = vmatpush1.xpose.msra.mxu0 0.0
    %175 = vmatprep.subr.mxu0 0.0
    %176 = vmatpush1.xpose.msra.mxu0 0.0
    %177 = vmatprep.subr.mxu0 0.0
    %178 = vmatpush1.xpose.msra.mxu0 0.0
    %179 = vmatprep.subr.mxu0 0.0
    %180 = vmatpush1.xpose.msra.mxu0 0.0
    %181 = vmatprep.mubr.f32.mxu0 0.0
    %182 = vmatmul.mubr.f32.gmra.mrb[0].mxu0 %v112
    %v183 = vpop.f32.mrb[0].mxu0
    %v184 = vadd.f32 0.0, %v183
    %v185 = vpop.f32.mrb[0].mxu0
    %186 = vdwg.mxu0
    %v187 = vsub.f32 0.0, %v184
    %v188 = vmul.f32 %v187, -2.0
    %v189 = vsub.f32 1.0, %v188
    %v190 = vmul.f32 %v107, -1.0
    %192 = vset.pattern.permute.xlu0 0
    %193 = vperm.xlu0 %192, %v190
    %v194 = vpop.permute.xlu0 %193
    %v196 = vsub.f32 %v189, %v194
    %v197 = vmul.f32 %v108, -1.0
    %v198 = vadd.f32 %v197, 1.0
    %v200 = vlaneseq
    %v201 = vshrl.u32 %v200, 7
    %v202 = vsub.s32 0, %v201
    %v203 = vrot.slane %v108, %v202
    %206 = vset.pattern.permute.xlu0 0
    %207 = vperm.xlu0 %206, %v107
    %v208 = vpop.permute.xlu0 %207
    %v210 = vmul.f32 %v203, %v208
    %v211 = vadd.f32 %v189, %v210
    %v212 = vmul.f32 %v196, %v196
    %v213 = vmul.f32 %v212, %v203
    %v214 = vmul.f32 %v196, 2.0
    %v216 = vlaneseq
    %v217 = vshrl.u32 %v216, 7
    %v218 = vsub.s32 0, %v217
    %v219 = vrot.slane %v198, %v218
    %v221 = vmul.f32 %v219, %v187
    %v222 = vmul.f32 %v214, %v221
    %v223 = vadd.f32 %v213, %v222
    %v224 = vmul.f32 %v198, %v198
    %v226 = vlaneseq
    %v227 = vshrl.u32 %v226, 7
    %v228 = vsub.s32 0, %v227
    %v229 = vrot.slane %v224, %v228
    %v231 = vmul.f32 %v229, %v208
    %v232 = vadd.f32 %v223, %v231
    %v233 = vmax.f32 %v232, 0.0
    %v234 = vrsqrt.pop %v233
    %v235 = vmul.f32 %v233, %v234
    %vm236 = vcmp.eq.f32.partialorder %v233, inf
    %v237 = vsel %vm236, %v233, %v235
    %vm238 = vcmp.eq.f32.partialorder %v233, 0.0
    %v239 = vand.u32 %v233, 2147483648
    %v240 = vsel %vm238, %v239, %v237
    %v241 = vmax.f32 %v211, 1e-15
    %v242 = vrcp.pop %v241
    %v243 = vmul.f32 %v240, %v242
    %v244 = vmax.f32 %v243, 0.0
    %v245 = vmin.f32 %v244, 0.9999999
    %v246 = vadd.f32 %v245, 1.0
    %v247 = vsub.f32 1.0, %v245
    %v248 = vrcp.pop %v247
    %v249 = vmul.f32 %v246, %v248
    %v250 = vlog2.pop %v249
    %v251 = vmul.f32 %v250, 0.6931472
    %v252 = vmul.f32 %v251, 0.5
    %v253 = vmul.f32 %v252, 2.0
    %v254 = vadd.f32 %v253, 1.0
    %v255 = vrcp.pop %v254
    %v256 = vmul.f32 10.0, %v255
    %v257 = vsub.f32 %v256, 10.0
    %v258 = vlaneseq
    %v259 = vshrl.u32 %v258, 7
    %v260 = vstv %s109
    %v261 = vadd.s32 %v259, %v260
    %v262 = vlaneseq
    %v263 = vand.u32 %v262, 127
    %vm264 = vcmp.ne.s32.totalorder %v261, %v263
    %vm265 = vcmp.lt.s32.totalorder %v263, 8
    %vm266 = vmand %vm264, %vm265
    %v267 = vsel %vm266, 1, 0
    %v268 = vcvt.s32.f32 %v267
    %v269 = vmul.f32 %v104, %v268
    %v270 = vmul.f32 %v257, 1.442695
    %v271 = vpow.pop %v270
    %v272 = vsel %vm266, %v271, 0.0
    %vm273 = vcmask 64512
    %v274 = vsel %vm273, %v272, 0.0
    %275 = vadd.xlane.f32.xlu0 %v274
    %v276 = vpop.xlane.xlu0 %275
    %v277 = vmax.f32 %v276, 1e-30
    %v278 = vlog2.pop %v277
    %v279 = vmul.f32 %v278, 0.6931472
    %v280 = vmul.f32 %v269, %v257
    %v281 = vsel %vm273, %v280, 0.0
    %282 = vadd.xlane.f32.xlu0 %v281
    %v283 = vpop.xlane.xlu0 %282
    %v284 = vsel %vm273, %v269, 0.0
    %285 = vadd.xlane.f32.xlu0 %v284
    %v286 = vpop.xlane.xlu0 %285
    %v287 = vmul.f32 %v286, %v279
    %v288 = vsub.f32 %v283, %v287
    %v289 = vmax.f32 %v286, 1.0
    %v290 = vrcp.pop %v289
    %v291 = vmul.f32 %v288, %v290
    %v292 = vmul.f32 %v291, -1.0
    %vm293 = vcmp.lt.s32.totalorder %v261, 8
    %v294 = vsel %vm293, %v292, 0.0
    %vm295 = vcmask 7168
    %296 = vst.msk [vmem:[#allocation13] sm:$0xff] %vm295, %v294
    // Predicated region
    $region50: #{tpu_custom_call.1} parent=1 // pred_check
      _
    $region51: #{tpu_custom_call.1} parent=1 // pred_check_branch
      %298 = sbr.rel (0) target = $region53
    $region52: #{tpu_custom_call.1} parent=1 // pred_region
      %s300 = ssub.s32 128, 128
      %301 = vsyncadd [#allocation4], %s300
      %s303 = sshll.u32 [#allocation13], 4
      %s304 = int_to_ptr.vmem [resolvable:$true] %s303
      %306 = dma.vmem_to_hbm [thread:$0]  %s304, 128, %s6, [#allocation4]
    $region53: #{tpu_custom_call.1} parent=1 // pred_fallthru
      _
    // Predicated region
    $region54: #{tpu_custom_call.1} parent=1 // pred_check
      _
    $region55: #{tpu_custom_call.1} parent=1 // pred_check_branch
      %308 = sbr.rel (0) target = $region57
    $region56: #{tpu_custom_call.1} parent=1 // pred_region
      %309 = dma.done [#allocation4], 128
    $region57: #{tpu_custom_call.1} parent=1 // pred_fallthru
      _
    %310 = vsyncpa [#allocation3], 1
    %311 = vsyncpa [#allocation6], 1
    %312 = vsyncpa [#allocation9], 1
    %313 = vsyncpa [#allocation12], 1
    %314 = vsyncpa [#allocation4], 1

</llo_original>
